<compile_context>
chip_gen: v7x
topology: tpu7x:2x2x1
jax: 0.10.0
libtpu: 0.0.40
codegen_flags: <defaults>
</compile_context>

<pallas_src>
import functools

import jax
import jax.numpy as jnp
from jax.experimental import pallas as pl
from jax.experimental.pallas import tpu as pltpu

BN_EPS = 1e-5


def _round_up(x, m):
    return (x + m - 1) // m * m


def _stats_kernel(x_ref, w_ref, b_ref, sum_ref, ssq_ref, *, m_total, m_padded, tm):
    # x_ref:   (tm, Kp)   bf16 row tile of the unfolded (zero-padded) input
    # w_ref:   (Kp, N)    bf16 transposed linear weight (fully resident)
    # b_ref:   (1, N)     f32 bias
    # sum_ref: (1, 1, N)  f32 per-tile partial sum of relu(x@W+b)
    # ssq_ref: (1, 1, N)  f32 per-tile partial sum of squares
    y = jnp.dot(x_ref[...], w_ref[...], preferred_element_type=jnp.float32)
    y = jnp.maximum(y + b_ref[...], 0.0)  # ReLU

    def _write(yv):
        sum_ref[0, :, :] = jnp.sum(yv, axis=0, keepdims=True)
        ssq_ref[0, :, :] = jnp.sum(yv * yv, axis=0, keepdims=True)

    if m_padded != m_total:
        # Only the final row tile contains zero-padded rows; gate the masking
        # there so the common path pays no iota/compare/select filler.
        i = pl.program_id(0)
        last = pl.num_programs(0) - 1

        @pl.when(i == last)
        def _():
            row = i * tm + jax.lax.broadcasted_iota(jnp.int32, y.shape, 0)
            _write(jnp.where(row < m_total, y, 0.0))

        @pl.when(i != last)
        def _():
            _write(y)
    else:
        _write(y)


def _matmul_bn_kernel(x_ref, w_ref, b_ref, scale_ref, shift_ref, o_ref):
    # Recompute y = relu(x@W + b) and apply the folded BatchNorm FMA.
    y = jnp.dot(x_ref[...], w_ref[...], preferred_element_type=jnp.float32)
    y = jnp.maximum(y + b_ref[...], 0.0)
    o_ref[...] = (y * scale_ref[...] + shift_ref[...]).astype(o_ref.dtype)


@functools.partial(jax.jit, static_argnames=("context_size", "dilation", "tm"))
def tdnn_forward(x, w_t, bias, gamma, beta, *, context_size, dilation, tm=1024):
    """x: (batch, seq_len, input_dim).  Returns (batch, new_seq_len, output_dim)."""
    B, S, D = x.shape
    K, N = w_t.shape
    assert K == context_size * D
    assert N % 128 == 0, "output_dim must be a multiple of 128"
    new_seq_len = S - dilation * (context_size - 1)
    M = B * new_seq_len

    Kp = _round_up(K, 128)           # pad contraction depth to a full lane tile
    tm = min(tm, _round_up(M, 16))   # multiple of 16 for bf16 sublane packing
    Mp = _round_up(M, tm)
    gm = Mp // tm

    # F.unfold equivalent: window c contributes features at slot c*input_dim + f.
    # Cast to bf16 first (halves HBM traffic), and make the K zero-pad an
    # operand of the concat so only one unfolded matrix is materialized.
    x_bf = x.astype(jnp.bfloat16)
    parts = [x_bf[:, c * dilation: c * dilation + new_seq_len, :]
             for c in range(context_size)]
    if Kp > K:
        parts.append(jnp.zeros((B, new_seq_len, Kp - K), jnp.bfloat16))
    x_p = jnp.concatenate(parts, axis=-1).reshape(M, Kp)
    if Mp > M:
        x_p = jnp.pad(x_p, ((0, Mp - M), (0, 0)))

    w_p = jnp.pad(w_t.astype(jnp.bfloat16), ((0, Kp - K), (0, 0)))
    bias2 = bias.reshape(1, N).astype(jnp.float32)

    # ---- Pass 1: stats only (no activation written to HBM). ----
    psum, pssq = pl.pallas_call(
        functools.partial(_stats_kernel, m_total=M, m_padded=Mp, tm=tm),
        out_shape=(
            jax.ShapeDtypeStruct((gm, 1, N), jnp.float32),
            jax.ShapeDtypeStruct((gm, 1, N), jnp.float32),
        ),
        grid_spec=pltpu.PrefetchScalarGridSpec(
            num_scalar_prefetch=0,
            grid=(gm,),
            in_specs=[
                pl.BlockSpec((tm, Kp), lambda i: (i, 0)),   # input row tile
                pl.BlockSpec((Kp, N), lambda i: (0, 0)),    # full weight
                pl.BlockSpec((1, N), lambda i: (0, 0)),     # bias
            ],
            out_specs=(
                pl.BlockSpec((1, 1, N), lambda i: (i, 0, 0)),   # partial sum
                pl.BlockSpec((1, 1, N), lambda i: (i, 0, 0)),   # partial sumsq
            ),
        ),
        compiler_params=pltpu.CompilerParams(
            dimension_semantics=("parallel",),
            vmem_limit_bytes=32 * 1024 * 1024,
        ),
    )(x_p, w_p, bias2)

    # ---- Glue: fold BatchNorm (training-mode batch stats, biased variance)
    # into a single per-channel FMA.  Tiny (N,)-sized work, done in XLA. ----
    csum = jnp.sum(psum, axis=(0, 1))
    cssq = jnp.sum(pssq, axis=(0, 1))
    inv_m = 1.0 / float(M)
    mean = csum * inv_m
    var = jnp.maximum(cssq * inv_m - mean * mean, 0.0)   # clamp cancellation noise
    scale1 = gamma.astype(jnp.float32) * jax.lax.rsqrt(var + BN_EPS)
    shift1 = beta.astype(jnp.float32) - mean * scale1
    scale = scale1.reshape(1, N)
    shift = shift1.reshape(1, N)

    # ---- Pass 2: recompute relu(x@W + b) and apply the folded BN FMA. ----
    out = pl.pallas_call(
        _matmul_bn_kernel,
        out_shape=jax.ShapeDtypeStruct((Mp, N), jnp.float32),
        grid_spec=pltpu.PrefetchScalarGridSpec(
            num_scalar_prefetch=0,
            grid=(gm,),
            in_specs=[
                pl.BlockSpec((tm, Kp), lambda i: (i, 0)),
                pl.BlockSpec((Kp, N), lambda i: (0, 0)),
                pl.BlockSpec((1, N), lambda i: (0, 0)),
                pl.BlockSpec((1, N), lambda i: (0, 0)),
                pl.BlockSpec((1, N), lambda i: (0, 0)),
            ],
            out_specs=pl.BlockSpec((tm, N), lambda i: (i, 0)),
        ),
        compiler_params=pltpu.CompilerParams(
            dimension_semantics=("parallel",),
            vmem_limit_bytes=32 * 1024 * 1024,
        ),
    )(x_p, w_p, bias2, scale, shift)

    return out[:M].reshape(B, new_seq_len, N)


def _reference(x, w_t, bias, gamma, beta, *, context_size, dilation):
    # Matches the kernel's precision choices (bf16 operands, f32 accumulate).
    B, S, D = x.shape
    new_seq_len = S - dilation * (context_size - 1)
    x_unf = jnp.concatenate(
        [x[:, c * dilation: c * dilation + new_seq_len, :]
         for c in range(context_size)],
        axis=-1,
    ).reshape(B * new_seq_len, -1)
    y = jnp.dot(x_unf.astype(jnp.bfloat16), w_t.astype(jnp.bfloat16),
                preferred_element_type=jnp.float32) + bias[None, :]
    y = jnp.maximum(y, 0.0)
    mean = jnp.mean(y, axis=0, keepdims=True)
    var = jnp.mean((y - mean) ** 2, axis=0, keepdims=True)   # biased variance
    out = (y - mean) * jax.lax.rsqrt(var + BN_EPS) * gamma[None, :] + beta[None, :]
    return out.reshape(B, new_seq_len, -1)


if __name__ == "__main__":
    # Small shapes consistent with the module defaults (input_dim=23, output_dim=512,
    # context_size=5, dilation=1).
    batch, seq_len = 2, 16
    input_dim, output_dim = 23, 512
    context_size, dilation = 5, 1

    key = jax.random.PRNGKey(0)
    kx, kw, kb = jax.random.split(key, 3)

    x = jax.random.normal(kx, (batch, seq_len, input_dim), dtype=jnp.float32)

    # nn.Linear(input_dim * context_size, output_dim) init, stored transposed (K, N).
    K = input_dim * context_size
    bound = 1.0 / jnp.sqrt(float(K))
    w_t = jax.random.uniform(kw, (K, output_dim), minval=-bound, maxval=bound,
                             dtype=jnp.float32)
    bias = jax.random.uniform(kb, (output_dim,), minval=-bound, maxval=bound,
                              dtype=jnp.float32)
    # nn.BatchNorm1d init: weight = 1, bias = 0.
    gamma = jnp.ones((output_dim,), dtype=jnp.float32)
    beta = jnp.zeros((output_dim,), dtype=jnp.float32)

    out = tdnn_forward(x, w_t, bias, gamma, beta,
                       context_size=context_size, dilation=dilation)
    out = jax.block_until_ready(out)

    ref = _reference(x, w_t, bias, gamma, beta,
                     context_size=context_size, dilation=dilation)
    new_seq_len = seq_len - dilation * (context_size - 1)
    assert out.shape == (batch, new_seq_len, output_dim)
    assert jnp.allclose(out, ref, atol=2e-3, rtol=2e-3), "mismatch vs reference"

    print("KERNEL_OK")
</pallas_src>

<mosaic_0001>
module attributes {stable_mosaic.version = 11 : i64} {
  func.func @_matmul_bn_kernel(%arg0: i32, %arg1: memref<32x128xbf16, #tpu.memory_space<vmem>>, %arg2: memref<128x512xbf16, #tpu.memory_space<vmem>>, %arg3: memref<1x512xf32, #tpu.memory_space<vmem>>, %arg4: memref<1x512xf32, #tpu.memory_space<vmem>>, %arg5: memref<1x512xf32, #tpu.memory_space<vmem>>, %arg6: memref<32x512xf32, #tpu.memory_space<vmem>>) attributes {dimension_semantics = [#tpu.dimension_semantics<parallel>], iteration_bounds = array<i64: 1>, scalar_prefetch = 0 : i64, scratch_operands = 0 : i64, tpu.core_type = #tpu.core_type<tc>, window_params = [{transform_indices = @transform_0, window_bounds = array<i64: 32, 128>}, {pipeline_mode = #tpu.pipeline_mode<synchronous>, transform_indices = @transform_1, window_bounds = array<i64: 128, 512>}, {pipeline_mode = #tpu.pipeline_mode<synchronous>, transform_indices = @transform_2, window_bounds = array<i64: 1, 512>}, {pipeline_mode = #tpu.pipeline_mode<synchronous>, transform_indices = @transform_3, window_bounds = array<i64: 1, 512>}, {pipeline_mode = #tpu.pipeline_mode<synchronous>, transform_indices = @transform_4, window_bounds = array<i64: 1, 512>}, {transform_indices = @transform_5, window_bounds = array<i64: 32, 512>}]} {
    %c0 = arith.constant 0 : index
    %c0_0 = arith.constant 0 : index
    %0 = vector.load %arg1[%c0, %c0_0] : memref<32x128xbf16, #tpu.memory_space<vmem>>, vector<32x128xbf16>
    %c0_1 = arith.constant 0 : index
    %c0_2 = arith.constant 0 : index
    %1 = vector.load %arg2[%c0_1, %c0_2] : memref<128x512xbf16, #tpu.memory_space<vmem>>, vector<128x512xbf16>
    %cst = arith.constant dense<0.000000e+00> : vector<32x512xf32>
    %2 = tpu.matmul %0, %1, %cst {dimension_numbers = #tpu.dot_dimension_numbers<[1], [0], [0], [1], [0, 0, 1, 1], [], []>} : vector<32x128xbf16>, vector<128x512xbf16>, vector<32x512xf32> -> vector<32x512xf32>
    %c0_3 = arith.constant 0 : index
    %c0_4 = arith.constant 0 : index
    %3 = vector.load %arg3[%c0_3, %c0_4] : memref<1x512xf32, #tpu.memory_space<vmem>>, vector<1x512xf32>
    %4 = vector.broadcast %3 : vector<1x512xf32> to vector<32x512xf32>
    %5 = arith.addf %2, %4 : vector<32x512xf32>
    %cst_5 = arith.constant 0.000000e+00 : f32
    %6 = vector.broadcast %cst_5 : f32 to vector<32x512xf32>
    %7 = arith.maximumf %5, %6 : vector<32x512xf32>
    %c0_6 = arith.constant 0 : index
    %c0_7 = arith.constant 0 : index
    %8 = vector.load %arg4[%c0_6, %c0_7] : memref<1x512xf32, #tpu.memory_space<vmem>>, vector<1x512xf32>
    %9 = vector.broadcast %8 : vector<1x512xf32> to vector<32x512xf32>
    %10 = arith.mulf %7, %9 : vector<32x512xf32>
    %c0_8 = arith.constant 0 : index
    %c0_9 = arith.constant 0 : index
    %11 = vector.load %arg5[%c0_8, %c0_9] : memref<1x512xf32, #tpu.memory_space<vmem>>, vector<1x512xf32>
    %12 = vector.broadcast %11 : vector<1x512xf32> to vector<32x512xf32>
    %13 = arith.addf %10, %12 : vector<32x512xf32>
    %c0_10 = arith.constant 0 : index
    %c0_11 = arith.constant 0 : index
    %14 = vector.load %arg6[%c0_10, %c0_11] : memref<32x512xf32, #tpu.memory_space<vmem>>, vector<32x512xf32>
    tpu.vector_store %arg6[%c0_10, %c0_11], %13 {strides = array<i32>} : memref<32x512xf32, #tpu.memory_space<vmem>>, vector<32x512xf32>,
    return
  }
  func.func @transform_0(%arg0: i32) -> (i32, i32) {
    %c0_i32 = arith.constant 0 : i32
    %c0_i32_0 = arith.constant 0 : i32
    return %arg0, %c0_i32 : i32, i32
  }
  func.func @transform_1(%arg0: i32) -> (i32, i32) {
    %c0_i32 = arith.constant 0 : i32
    %c0_i32_0 = arith.constant 0 : i32
    %c0_i32_1 = arith.constant 0 : i32
    return %c0_i32, %c0_i32_0 : i32, i32
  }
  func.func @transform_2(%arg0: i32) -> (i32, i32) {
    %c0_i32 = arith.constant 0 : i32
    %c0_i32_0 = arith.constant 0 : i32
    %c0_i32_1 = arith.constant 0 : i32
    return %c0_i32, %c0_i32_0 : i32, i32
  }
  func.func @transform_3(%arg0: i32) -> (i32, i32) {
    %c0_i32 = arith.constant 0 : i32
    %c0_i32_0 = arith.constant 0 : i32
    %c0_i32_1 = arith.constant 0 : i32
    return %c0_i32, %c0_i32_0 : i32, i32
  }
  func.func @transform_4(%arg0: i32) -> (i32, i32) {
    %c0_i32 = arith.constant 0 : i32
    %c0_i32_0 = arith.constant 0 : i32
    %c0_i32_1 = arith.constant 0 : i32
    return %c0_i32, %c0_i32_0 : i32, i32
  }
  func.func @transform_5(%arg0: i32) -> (i32, i32) {
    %c0_i32 = arith.constant 0 : i32
    %c0_i32_0 = arith.constant 0 : i32
    return %arg0, %c0_i32 : i32, i32
  }
}

module attributes {stable_mosaic.version = 11 : i64} {
  func.func @_stats_kernel(%arg0: i32, %arg1: memref<32x128xbf16, #tpu.memory_space<vmem>>, %arg2: memref<128x512xbf16, #tpu.memory_space<vmem>>, %arg3: memref<1x512xf32, #tpu.memory_space<vmem>>, %arg4: memref<1x1x512xf32, #tpu.memory_space<vmem>>, %arg5: memref<1x1x512xf32, #tpu.memory_space<vmem>>) attributes {dimension_semantics = [#tpu.dimension_semantics<parallel>], iteration_bounds = array<i64: 1>, scalar_prefetch = 0 : i64, scratch_operands = 0 : i64, tpu.core_type = #tpu.core_type<tc>, window_params = [{transform_indices = @transform_0, window_bounds = array<i64: 32, 128>}, {pipeline_mode = #tpu.pipeline_mode<synchronous>, transform_indices = @transform_1, window_bounds = array<i64: 128, 512>}, {pipeline_mode = #tpu.pipeline_mode<synchronous>, transform_indices = @transform_2, window_bounds = array<i64: 1, 512>}, {transform_indices = @transform_3, window_bounds = array<i64: 1, 1, 512>}, {transform_indices = @transform_4, window_bounds = array<i64: 1, 1, 512>}]} {
    %c0 = arith.constant 0 : index
    %c0_0 = arith.constant 0 : index
    %0 = vector.load %arg1[%c0, %c0_0] : memref<32x128xbf16, #tpu.memory_space<vmem>>, vector<32x128xbf16>
    %c0_1 = arith.constant 0 : index
    %c0_2 = arith.constant 0 : index
    %1 = vector.load %arg2[%c0_1, %c0_2] : memref<128x512xbf16, #tpu.memory_space<vmem>>, vector<128x512xbf16>
    %cst = arith.constant dense<0.000000e+00> : vector<32x512xf32>
    %2 = tpu.matmul %0, %1, %cst {dimension_numbers = #tpu.dot_dimension_numbers<[1], [0], [0], [1], [0, 0, 1, 1], [], []>} : vector<32x128xbf16>, vector<128x512xbf16>, vector<32x512xf32> -> vector<32x512xf32>
    %c0_3 = arith.constant 0 : index
    %c0_4 = arith.constant 0 : index
    %3 = vector.load %arg3[%c0_3, %c0_4] : memref<1x512xf32, #tpu.memory_space<vmem>>, vector<1x512xf32>
    %4 = vector.broadcast %3 : vector<1x512xf32> to vector<32x512xf32>
    %5 = arith.addf %2, %4 : vector<32x512xf32>
    %cst_5 = arith.constant 0.000000e+00 : f32
    %6 = vector.broadcast %cst_5 : f32 to vector<32x512xf32>
    %7 = arith.maximumf %5, %6 : vector<32x512xf32>
    %c0_i32 = arith.constant 0 : i32
    %8 = arith.cmpi eq, %arg0, %c0_i32 : i32
    %9 = arith.extui %8 : i1 to i32
    %c0_i32_6 = arith.constant 0 : i32
    %10 = arith.cmpi ne, %9, %c0_i32_6 : i32
    scf.if %10 {
      %c32_i32 = arith.constant 32 : i32
      %14 = arith.muli %arg0, %c32_i32 : i32
      %15 = tpu.iota {dimensions = array<i32: 0>} : vector<32x512xi32>
      %16 = vector.broadcast %14 : i32 to vector<32x512xi32>
      %17 = arith.addi %16, %15 : vector<32x512xi32>
      %c24_i32 = arith.constant 24 : i32
      %18 = vector.broadcast %c24_i32 : i32 to vector<32x512xi32>
      %19 = arith.cmpi slt, %17, %18 : vector<32x512xi32>
      %cst_9 = arith.constant 0.000000e+00 : f32
      %20 = vector.broadcast %cst_9 : f32 to vector<32x512xf32>
      %21 = arith.select %19, %7, %20 : vector<32x512xi1>, vector<32x512xf32>
      %cst_10 = arith.constant dense<0.000000e+00> : vector<512xf32>
      %22 = vector.multi_reduction <add>, %21, %cst_10 [0] : vector<32x512xf32> to vector<512xf32>
      %23 = vector.shape_cast %22 : vector<512xf32> to vector<1x512xf32>
      %c0_11 = arith.constant 0 : index
      %c0_12 = arith.constant 0 : index
      %c0_13 = arith.constant 0 : index
      %24 = vector.load %arg4[%c0_11, %c0_12, %c0_13] : memref<1x1x512xf32, #tpu.memory_space<vmem>>, vector<1x1x512xf32>
      %25 = vector.shape_cast %24 : vector<1x1x512xf32> to vector<1x512xf32>
      %26 = vector.shape_cast %23 : vector<1x512xf32> to vector<1x1x512xf32>
      tpu.vector_store %arg4[%c0_11, %c0_12, %c0_13], %26 {strides = array<i32>} : memref<1x1x512xf32, #tpu.memory_space<vmem>>, vector<1x1x512xf32>,
      %27 = arith.mulf %21, %21 : vector<32x512xf32>
      %cst_14 = arith.constant dense<0.000000e+00> : vector<512xf32>
      %28 = vector.multi_reduction <add>, %27, %cst_14 [0] : vector<32x512xf32> to vector<512xf32>
      %29 = vector.shape_cast %28 : vector<512xf32> to vector<1x512xf32>
      %c0_15 = arith.constant 0 : index
      %c0_16 = arith.constant 0 : index
      %c0_17 = arith.constant 0 : index
      %30 = vector.load %arg5[%c0_15, %c0_16, %c0_17] : memref<1x1x512xf32, #tpu.memory_space<vmem>>, vector<1x1x512xf32>
      %31 = vector.shape_cast %30 : vector<1x1x512xf32> to vector<1x512xf32>
      %32 = vector.shape_cast %29 : vector<1x512xf32> to vector<1x1x512xf32>
      tpu.vector_store %arg5[%c0_15, %c0_16, %c0_17], %32 {strides = array<i32>} : memref<1x1x512xf32, #tpu.memory_space<vmem>>, vector<1x1x512xf32>,
    } else {
    }
    %c0_i32_7 = arith.constant 0 : i32
    %11 = arith.cmpi ne, %arg0, %c0_i32_7 : i32
    %12 = arith.extui %11 : i1 to i32
    %c0_i32_8 = arith.constant 0 : i32
    %13 = arith.cmpi ne, %12, %c0_i32_8 : i32
    scf.if %13 {
      %cst_9 = arith.constant dense<0.000000e+00> : vector<512xf32>
      %14 = vector.multi_reduction <add>, %7, %cst_9 [0] : vector<32x512xf32> to vector<512xf32>
      %15 = vector.shape_cast %14 : vector<512xf32> to vector<1x512xf32>
      %c0_10 = arith.constant 0 : index
      %c0_11 = arith.constant 0 : index
      %c0_12 = arith.constant 0 : index
      %16 = vector.load %arg4[%c0_10, %c0_11, %c0_12] : memref<1x1x512xf32, #tpu.memory_space<vmem>>, vector<1x1x512xf32>
      %17 = vector.shape_cast %16 : vector<1x1x512xf32> to vector<1x512xf32>
      %18 = vector.shape_cast %15 : vector<1x512xf32> to vector<1x1x512xf32>
      tpu.vector_store %arg4[%c0_10, %c0_11, %c0_12], %18 {strides = array<i32>} : memref<1x1x512xf32, #tpu.memory_space<vmem>>, vector<1x1x512xf32>,
      %19 = arith.mulf %7, %7 : vector<32x512xf32>
      %cst_13 = arith.constant dense<0.000000e+00> : vector<512xf32>
      %20 = vector.multi_reduction <add>, %19, %cst_13 [0] : vector<32x512xf32> to vector<512xf32>
      %21 = vector.shape_cast %20 : vector<512xf32> to vector<1x512xf32>
      %c0_14 = arith.constant 0 : index
      %c0_15 = arith.constant 0 : index
      %c0_16 = arith.constant 0 : index
      %22 = vector.load %arg5[%c0_14, %c0_15, %c0_16] : memref<1x1x512xf32, #tpu.memory_space<vmem>>, vector<1x1x512xf32>
      %23 = vector.shape_cast %22 : vector<1x1x512xf32> to vector<1x512xf32>
      %24 = vector.shape_cast %21 : vector<1x512xf32> to vector<1x1x512xf32>
      tpu.vector_store %arg5[%c0_14, %c0_15, %c0_16], %24 {strides = array<i32>} : memref<1x1x512xf32, #tpu.memory_space<vmem>>, vector<1x1x512xf32>,
    } else {
    }
    return
  }
  func.func @transform_0(%arg0: i32) -> (i32, i32) {
    %c0_i32 = arith.constant 0 : i32
    %c0_i32_0 = arith.constant 0 : i32
    return %arg0, %c0_i32 : i32, i32
  }
  func.func @transform_1(%arg0: i32) -> (i32, i32) {
    %c0_i32 = arith.constant 0 : i32
    %c0_i32_0 = arith.constant 0 : i32
    %c0_i32_1 = arith.constant 0 : i32
    return %c0_i32, %c0_i32_0 : i32, i32
  }
  func.func @transform_2(%arg0: i32) -> (i32, i32) {
    %c0_i32 = arith.constant 0 : i32
    %c0_i32_0 = arith.constant 0 : i32
    %c0_i32_1 = arith.constant 0 : i32
    return %c0_i32, %c0_i32_0 : i32, i32
  }
  func.func @transform_3(%arg0: i32) -> (i32, i32, i32) {
    %c0_i32 = arith.constant 0 : i32
    %c0_i32_0 = arith.constant 0 : i32
    %c0_i32_1 = arith.constant 0 : i32
    return %arg0, %c0_i32, %c0_i32_0 : i32, i32, i32
  }
  func.func @transform_4(%arg0: i32) -> (i32, i32, i32) {
    %c0_i32 = arith.constant 0 : i32
    %c0_i32_0 = arith.constant 0 : i32
    %c0_i32_1 = arith.constant 0 : i32
    return %arg0, %c0_i32, %c0_i32_0 : i32, i32, i32
  }
}

</mosaic_0001>

<llo_original>
// kernel: tdnn_forward.3
$region0: #{tdnn_forward.3}
  #allocation0 [shape = 'u32[]', space=smem, size = 0x4, offset = 0x4, fixed_abs, tag = 'smem constant byte address 0x4 - core index']
  #allocation1 [shape = 'u32[144,128]{1,0:T(1,128)}', space=vmem, size = 0x12000, scoped, tag = 'internal scratch']
  %s0 = inlined_call_operand.vmem [shape: bf16[32,128], index: 0, kind: input, shape index: {}]
  %s1 = inlined_call_operand.vmem [shape: bf16[128,512], index: 1, kind: input, shape index: {}]
  %s2 = inlined_call_operand.vmem [shape: f32[1,512], index: 2, kind: input, shape index: {}]
  %s3 = inlined_call_operand.vmem [shape: f32[1,512], index: 3, kind: input, shape index: {}]
  %s4 = inlined_call_operand.vmem [shape: f32[1,512], index: 4, kind: input, shape index: {}]
  %s5 = inlined_call_operand.vmem [shape: f32[32,512], index: 5, kind: output, shape index: {}]
  %s6 = sld [smem:[#allocation0]]
  $region30: #{tdnn_forward.3} parent=0
    _
  %s8 = ssub.s32 1, %s6
  %s9 = scalar_select 0, %s8, %s6
  // Predicated region
  $region2: #{tdnn_forward.3} parent=0 // pred_check
    _
  $region3: #{tdnn_forward.3} parent=0 // pred_check_branch
    %11 = sbr.rel (0) target = $region5
  $region4: #{tdnn_forward.3} parent=0 // pred_region
    _
  $region5: #{tdnn_forward.3} parent=0 // pred_fallthru
    _
  // Predicated region
  $region6: #{tdnn_forward.3} parent=0 // pred_check
    _
  $region7: #{tdnn_forward.3} parent=0 // pred_check_branch
    %13 = sbr.rel (0) target = $region9
  $region8: #{tdnn_forward.3} parent=0 // pred_region
    _
  $region9: #{tdnn_forward.3} parent=0 // pred_fallthru
    _
  // Predicated region
  $region10: #{tdnn_forward.3} parent=0 // pred_check
    _
  $region11: #{tdnn_forward.3} parent=0 // pred_check_branch
    %15 = sbr.rel (0) target = $region13
  $region12: #{tdnn_forward.3} parent=0 // pred_region
    _
  $region13: #{tdnn_forward.3} parent=0 // pred_fallthru
    _
  // Predicated region
  $region14: #{tdnn_forward.3} parent=0 // pred_check
    _
  $region15: #{tdnn_forward.3} parent=0 // pred_check_branch
    %17 = sbr.rel (0) target = $region17
  $region16: #{tdnn_forward.3} parent=0 // pred_region
    _
  $region17: #{tdnn_forward.3} parent=0 // pred_fallthru
    _
  // Predicated region
  $region18: #{tdnn_forward.3} parent=0 // pred_check
    _
  $region19: #{tdnn_forward.3} parent=0 // pred_check_branch
    %19 = sbr.rel (0) target = $region21
  $region20: #{tdnn_forward.3} parent=0 // pred_region
    _
  $region21: #{tdnn_forward.3} parent=0 // pred_fallthru
    _
  %v21 = vld [vmem:[%s0] sm:$0xf]
  %v22 = vld [vmem:[%s0 + $0x4] sm:$0xf]
  %v23 = vld [vmem:[%s0 + $0x8] sm:$0xf]
  %v24 = vld [vmem:[%s0 + $0xc] sm:$0xf]
  %v25 = vld [vmem:[%s1] sm:$0xff]
  %v26 = vld [vmem:[%s1 + $0x8] sm:$0xff]
  %v27 = vld [vmem:[%s1 + $0x10] sm:$0xff]
  %v28 = vld [vmem:[%s1 + $0x18] sm:$0xff]
  %v29 = vld [vmem:[%s1 + $0x20] sm:$0xff]
  %v30 = vld [vmem:[%s1 + $0x28] sm:$0xff]
  %v31 = vld [vmem:[%s1 + $0x30] sm:$0xff]
  %v32 = vld [vmem:[%s1 + $0x38] sm:$0xff]
  %v33 = vld [vmem:[%s1 + $0x40] sm:$0xff]
  %v34 = vld [vmem:[%s1 + $0x48] sm:$0xff]
  %v35 = vld [vmem:[%s1 + $0x50] sm:$0xff]
  %v36 = vld [vmem:[%s1 + $0x58] sm:$0xff]
  %v37 = vld [vmem:[%s1 + $0x60] sm:$0xff]
  %v38 = vld [vmem:[%s1 + $0x68] sm:$0xff]
  %v39 = vld [vmem:[%s1 + $0x70] sm:$0xff]
  %v40 = vld [vmem:[%s1 + $0x78] sm:$0xff]
  %v41 = vld [vmem:[%s1 + $0x80] sm:$0xff]
  %v42 = vld [vmem:[%s1 + $0x88] sm:$0xff]
  %v43 = vld [vmem:[%s1 + $0x90] sm:$0xff]
  %v44 = vld [vmem:[%s1 + $0x98] sm:$0xff]
  %v45 = vld [vmem:[%s1 + $0xa0] sm:$0xff]
  %v46 = vld [vmem:[%s1 + $0xa8] sm:$0xff]
  %v47 = vld [vmem:[%s1 + $0xb0] sm:$0xff]
  %v48 = vld [vmem:[%s1 + $0xb8] sm:$0xff]
  %v49 = vld [vmem:[%s1 + $0xc0] sm:$0xff]
  %v50 = vld [vmem:[%s1 + $0xc8] sm:$0xff]
  %v51 = vld [vmem:[%s1 + $0xd0] sm:$0xff]
  %v52 = vld [vmem:[%s1 + $0xd8] sm:$0xff]
  %v53 = vld [vmem:[%s1 + $0xe0] sm:$0xff]
  %v54 = vld [vmem:[%s1 + $0xe8] sm:$0xff]
  %v55 = vld [vmem:[%s1 + $0xf0] sm:$0xff]
  %v56 = vld [vmem:[%s1 + $0xf8] sm:$0xff]
  %v57 = vld [vmem:[%s2] sm:$0xf]
  %v59 = vlaneseq
  %v60 = vshrl.u32 %v59, 7
  %v61 = vsub.s32 0, %v60
  %v62 = vrot.slane %v57, %v61
  %v63 = vlaneseq
  %v64 = vshrl.u32 %v63, 7
  %v65 = vsub.s32 1, %v64
  %v66 = vrot.slane %v57, %v65
  %v67 = vlaneseq
  %v68 = vshrl.u32 %v67, 7
  %v69 = vsub.s32 2, %v68
  %v70 = vrot.slane %v57, %v69
  %v71 = vlaneseq
  %v72 = vshrl.u32 %v71, 7
  %v73 = vsub.s32 3, %v72
  %v74 = vrot.slane %v57, %v73
  %v83 = vunpack.c.l.b16 %v21
  %v84 = vunpack.c.l.b16 %v22
  %v85 = vunpack.c.l.b16 %v23
  %v86 = vunpack.c.l.b16 %v24
  %v87 = vpack.c.b16 %v84, %v83
  %v88 = vpack.c.b16 %v86, %v85
  %v123 = vunpack.c.l.b16 %v25
  %v124 = vunpack.c.h.b16 %v25
  %v125 = vunpack.c.l.b16 %v26
  %v126 = vunpack.c.h.b16 %v26
  %v127 = vunpack.c.l.b16 %v27
  %v128 = vunpack.c.h.b16 %v27
  %v129 = vunpack.c.l.b16 %v28
  %v130 = vunpack.c.h.b16 %v28
  %v131 = vunpack.c.l.b16 %v29
  %v132 = vunpack.c.h.b16 %v29
  %v133 = vunpack.c.l.b16 %v30
  %v134 = vunpack.c.h.b16 %v30
  %v135 = vunpack.c.l.b16 %v31
  %v136 = vunpack.c.h.b16 %v31
  %v137 = vunpack.c.l.b16 %v32
  %v138 = vunpack.c.h.b16 %v32
  %v139 = vunpack.c.l.b16 %v33
  %v140 = vunpack.c.h.b16 %v33
  %v141 = vunpack.c.l.b16 %v34
  %v142 = vunpack.c.h.b16 %v34
  %v143 = vunpack.c.l.b16 %v35
  %v144 = vunpack.c.h.b16 %v35
  %v145 = vunpack.c.l.b16 %v36
  %v146 = vunpack.c.h.b16 %v36
  %v147 = vunpack.c.l.b16 %v37
  %v148 = vunpack.c.h.b16 %v37
  %v149 = vunpack.c.l.b16 %v38
  %v150 = vunpack.c.h.b16 %v38
  %v151 = vunpack.c.l.b16 %v39
  %v152 = vunpack.c.h.b16 %v39
  %v153 = vunpack.c.l.b16 %v40
  %v154 = vunpack.c.h.b16 %v40
  %v155 = vunpack.c.l.b16 %v41
  %v156 = vunpack.c.h.b16 %v41
  %v157 = vunpack.c.l.b16 %v42
  %v158 = vunpack.c.h.b16 %v42
  %v159 = vunpack.c.l.b16 %v43
  %v160 = vunpack.c.h.b16 %v43
  %v161 = vunpack.c.l.b16 %v44
  %v162 = vunpack.c.h.b16 %v44
  %v163 = vunpack.c.l.b16 %v45
  %v164 = vunpack.c.h.b16 %v45
  %v165 = vunpack.c.l.b16 %v46
  %v166 = vunpack.c.h.b16 %v46
  %v167 = vunpack.c.l.b16 %v47
  %v168 = vunpack.c.h.b16 %v47
  %v169 = vunpack.c.l.b16 %v48
  %v170 = vunpack.c.h.b16 %v48
  %v171 = vunpack.c.l.b16 %v49
  %v172 = vunpack.c.h.b16 %v49
  %v173 = vunpack.c.l.b16 %v50
  %v174 = vunpack.c.h.b16 %v50
  %v175 = vunpack.c.l.b16 %v51
  %v176 = vunpack.c.h.b16 %v51
  %v177 = vunpack.c.l.b16 %v52
  %v178 = vunpack.c.h.b16 %v52
  %v179 = vunpack.c.l.b16 %v53
  %v180 = vunpack.c.h.b16 %v53
  %v181 = vunpack.c.l.b16 %v54
  %v182 = vunpack.c.h.b16 %v54
  %v183 = vunpack.c.l.b16 %v55
  %v184 = vunpack.c.h.b16 %v55
  %v185 = vunpack.c.l.b16 %v56
  %v186 = vunpack.c.h.b16 %v56
  %v187 = vpack.c.b16 %v127, %v123
  %v188 = vpack.c.b16 %v128, %v124
  %v189 = vpack.c.b16 %v129, %v125
  %v190 = vpack.c.b16 %v130, %v126
  %v191 = vpack.c.b16 %v135, %v131
  %v192 = vpack.c.b16 %v136, %v132
  %v193 = vpack.c.b16 %v137, %v133
  %v194 = vpack.c.b16 %v138, %v134
  %v195 = vpack.c.b16 %v143, %v139
  %v196 = vpack.c.b16 %v144, %v140
  %v197 = vpack.c.b16 %v145, %v141
  %v198 = vpack.c.b16 %v146, %v142
  %v199 = vpack.c.b16 %v151, %v147
  %v200 = vpack.c.b16 %v152, %v148
  %v201 = vpack.c.b16 %v153, %v149
  %v202 = vpack.c.b16 %v154, %v150
  %v203 = vpack.c.b16 %v159, %v155
  %v204 = vpack.c.b16 %v160, %v156
  %v205 = vpack.c.b16 %v161, %v157
  %v206 = vpack.c.b16 %v162, %v158
  %v207 = vpack.c.b16 %v167, %v163
  %v208 = vpack.c.b16 %v168, %v164
  %v209 = vpack.c.b16 %v169, %v165
  %v210 = vpack.c.b16 %v170, %v166
  %v211 = vpack.c.b16 %v175, %v171
  %v212 = vpack.c.b16 %v176, %v172
  %v213 = vpack.c.b16 %v177, %v173
  %v214 = vpack.c.b16 %v178, %v174
  %v215 = vpack.c.b16 %v183, %v179
  %v216 = vpack.c.b16 %v184, %v180
  %v217 = vpack.c.b16 %v185, %v181
  %v218 = vpack.c.b16 %v186, %v182
  %251 = vmatprep.subr.bf16.mxu0 %v188
  %252 = vmatpush1.bf16.msra.mxu0 %v187
  %253 = vmatprep.subr.bf16.mxu0 %v192
  %254 = vmatpush1.bf16.msra.mxu0 %v191
  %255 = vmatprep.subr.bf16.mxu0 %v196
  %256 = vmatpush1.bf16.msra.mxu0 %v195
  %257 = vmatprep.subr.bf16.mxu0 %v200
  %258 = vmatpush1.bf16.msra.mxu0 %v199
  %259 = vmatprep.subr.bf16.mxu0 %v204
  %260 = vmatpush1.bf16.msra.mxu0 %v203
  %261 = vmatprep.subr.bf16.mxu0 %v208
  %262 = vmatpush1.bf16.msra.mxu0 %v207
  %263 = vmatprep.subr.bf16.mxu0 %v212
  %264 = vmatpush1.bf16.msra.mxu0 %v211
  %265 = vmatprep.subr.bf16.mxu0 %v216
  %266 = vmatpush1.bf16.msra.mxu0 %v215
  %267 = vmatprep.subr.bf16.mxu0 0
  %268 = vmatpush1.bf16.msra.mxu0 0
  %269 = vmatprep.subr.bf16.mxu0 0
  %270 = vmatpush1.bf16.msra.mxu0 0
  %271 = vmatprep.subr.bf16.mxu0 0
  %272 = vmatpush1.bf16.msra.mxu0 0
  %273 = vmatprep.subr.bf16.mxu0 0
  %274 = vmatpush1.bf16.msra.mxu0 0
  %275 = vmatprep.subr.bf16.mxu0 0
  %276 = vmatpush1.bf16.msra.mxu0 0
  %277 = vmatprep.subr.bf16.mxu0 0
  %278 = vmatpush1.bf16.msra.mxu0 0
  %279 = vmatprep.subr.bf16.mxu0 0
  %280 = vmatpush1.bf16.msra.mxu0 0
  %281 = vmatprep.subr.bf16.mxu0 0
  %282 = vmatpush1.bf16.msra.mxu0 0
  %283 = vmatprep.mubr.bf16.mxu0 0
  %284 = vmatmul.mubr.bf16.gmra.mrb[0].mxu0 %v87
  %v285 = vpop.f32.mrb[0].mxu0
  %v286 = vadd.f32 %v62, %v285
  %v287 = vpop.f32.mrb[0].mxu0
  %v288 = vadd.f32 %v66, %v287
  %v289 = vpop.f32.mrb[0].mxu0
  %v290 = vadd.f32 %v62, %v289
  %v291 = vpop.f32.mrb[0].mxu0
  %v292 = vadd.f32 %v66, %v291
  %293 = vmatprep.mubr.bf16.mxu0 0
  %294 = vmatmul.mubr.bf16.gmra.mrb[0].mxu0 %v88
  %v295 = vpop.f32.mrb[0].mxu0
  %v296 = vadd.f32 %v62, %v295
  %v297 = vpop.f32.mrb[0].mxu0
  %v298 = vadd.f32 %v66, %v297
  %v299 = vpop.f32.mrb[0].mxu0
  %v300 = vadd.f32 %v62, %v299
  %v301 = vpop.f32.mrb[0].mxu0
  %v302 = vadd.f32 %v66, %v301
  %303 = vdwg.mxu0
  %304 = vmatprep.subr.bf16.mxu0 %v190
  %305 = vmatpush1.bf16.msra.mxu0 %v189
  %306 = vmatprep.subr.bf16.mxu0 %v194
  %307 = vmatpush1.bf16.msra.mxu0 %v193
  %308 = vmatprep.subr.bf16.mxu0 %v198
  %309 = vmatpush1.bf16.msra.mxu0 %v197
  %310 = vmatprep.subr.bf16.mxu0 %v202
  %311 = vmatpush1.bf16.msra.mxu0 %v201
  %312 = vmatprep.subr.bf16.mxu0 %v206
  %313 = vmatpush1.bf16.msra.mxu0 %v205
  %314 = vmatprep.subr.bf16.mxu0 %v210
  %315 = vmatpush1.bf16.msra.mxu0 %v209
  %316 = vmatprep.subr.bf16.mxu0 %v214
  %317 = vmatpush1.bf16.msra.mxu0 %v213
  %318 = vmatprep.subr.bf16.mxu0 %v218
  %319 = vmatpush1.bf16.msra.mxu0 %v217
  %320 = vmatprep.subr.bf16.mxu0 0
  %321 = vmatpush1.bf16.msra.mxu0 0
  %322 = vmatprep.subr.bf16.mxu0 0
  %323 = vmatpush1.bf16.msra.mxu0 0
  %324 = vmatprep.subr.bf16.mxu0 0
  %325 = vmatpush1.bf16.msra.mxu0 0
  %326 = vmatprep.subr.bf16.mxu0 0
  %327 = vmatpush1.bf16.msra.mxu0 0
  %328 = vmatprep.subr.bf16.mxu0 0
  %329 = vmatpush1.bf16.msra.mxu0 0
  %330 = vmatprep.subr.bf16.mxu0 0
  %331 = vmatpush1.bf16.msra.mxu0 0
  %332 = vmatprep.subr.bf16.mxu0 0
  %333 = vmatpush1.bf16.msra.mxu0 0
  %334 = vmatprep.subr.bf16.mxu0 0
  %335 = vmatpush1.bf16.msra.mxu0 0
  %336 = vmatprep.mubr.bf16.mxu0 0
  %337 = vmatmul.mubr.bf16.gmra.mrb[0].mxu0 %v87
  %v338 = vpop.f32.mrb[0].mxu0
  %v339 = vadd.f32 %v70, %v338
  %v340 = vpop.f32.mrb[0].mxu0
  %v341 = vadd.f32 %v74, %v340
  %v342 = vpop.f32.mrb[0].mxu0
  %v343 = vadd.f32 %v70, %v342
  %v344 = vpop.f32.mrb[0].mxu0
  %v345 = vadd.f32 %v74, %v344
  %346 = vmatprep.mubr.bf16.mxu0 0
  %347 = vmatmul.mubr.bf16.gmra.mrb[0].mxu0 %v88
  %v348 = vpop.f32.mrb[0].mxu0
  %v349 = vadd.f32 %v70, %v348
  %v350 = vpop.f32.mrb[0].mxu0
  %v351 = vadd.f32 %v74, %v350
  %v352 = vpop.f32.mrb[0].mxu0
  %v353 = vadd.f32 %v70, %v352
  %v354 = vpop.f32.mrb[0].mxu0
  %v355 = vadd.f32 %v74, %v354
  %356 = vdwg.mxu0
  %v357 = vmax.f32 %v286, 0.0
  %v358 = vmax.f32 %v288, 0.0
  %v359 = vmax.f32 %v339, 0.0
  %v360 = vmax.f32 %v341, 0.0
  %v361 = vmax.f32 %v290, 0.0
  %v362 = vmax.f32 %v292, 0.0
  %v363 = vmax.f32 %v343, 0.0
  %v364 = vmax.f32 %v345, 0.0
  %v365 = vmax.f32 %v296, 0.0
  %v366 = vmax.f32 %v298, 0.0
  %v367 = vmax.f32 %v349, 0.0
  %v368 = vmax.f32 %v351, 0.0
  %v369 = vmax.f32 %v300, 0.0
  %v370 = vmax.f32 %v302, 0.0
  %v371 = vmax.f32 %v353, 0.0
  %v372 = vmax.f32 %v355, 0.0
  %v373 = vld [vmem:[%s3] sm:$0xf]
  %v375 = vlaneseq
  %v376 = vshrl.u32 %v375, 7
  %v377 = vsub.s32 0, %v376
  %v378 = vrot.slane %v373, %v377
  %v379 = vlaneseq
  %v380 = vshrl.u32 %v379, 7
  %v381 = vsub.s32 1, %v380
  %v382 = vrot.slane %v373, %v381
  %v383 = vlaneseq
  %v384 = vshrl.u32 %v383, 7
  %v385 = vsub.s32 2, %v384
  %v386 = vrot.slane %v373, %v385
  %v387 = vlaneseq
  %v388 = vshrl.u32 %v387, 7
  %v389 = vsub.s32 3, %v388
  %v390 = vrot.slane %v373, %v389
  %v395 = vmul.f32 %v357, %v378
  %v396 = vmul.f32 %v358, %v382
  %v397 = vmul.f32 %v359, %v386
  %v398 = vmul.f32 %v360, %v390
  %v399 = vmul.f32 %v361, %v378
  %v400 = vmul.f32 %v362, %v382
  %v401 = vmul.f32 %v363, %v386
  %v402 = vmul.f32 %v364, %v390
  %v403 = vmul.f32 %v365, %v378
  %v404 = vmul.f32 %v366, %v382
  %v405 = vmul.f32 %v367, %v386
  %v406 = vmul.f32 %v368, %v390
  %v407 = vmul.f32 %v369, %v378
  %v408 = vmul.f32 %v370, %v382
  %v409 = vmul.f32 %v371, %v386
  %v410 = vmul.f32 %v372, %v390
  %v411 = vld [vmem:[%s4] sm:$0xf]
  %v413 = vlaneseq
  %v414 = vshrl.u32 %v413, 7
  %v415 = vsub.s32 0, %v414
  %v416 = vrot.slane %v411, %v415
  %v417 = vlaneseq
  %v418 = vshrl.u32 %v417, 7
  %v419 = vsub.s32 1, %v418
  %v420 = vrot.slane %v411, %v419
  %v421 = vlaneseq
  %v422 = vshrl.u32 %v421, 7
  %v423 = vsub.s32 2, %v422
  %v424 = vrot.slane %v411, %v423
  %v425 = vlaneseq
  %v426 = vshrl.u32 %v425, 7
  %v427 = vsub.s32 3, %v426
  %v428 = vrot.slane %v411, %v427
  %v433 = vadd.f32 %v395, %v416
  %v434 = vadd.f32 %v396, %v420
  %v435 = vadd.f32 %v397, %v424
  %v436 = vadd.f32 %v398, %v428
  %v437 = vadd.f32 %v399, %v416
  %v438 = vadd.f32 %v400, %v420
  %v439 = vadd.f32 %v401, %v424
  %v440 = vadd.f32 %v402, %v428
  %v441 = vadd.f32 %v403, %v416
  %v442 = vadd.f32 %v404, %v420
  %v443 = vadd.f32 %v405, %v424
  %v444 = vadd.f32 %v406, %v428
  %v445 = vadd.f32 %v407, %v416
  %v446 = vadd.f32 %v408, %v420
  %v447 = vadd.f32 %v409, %v424
  %v448 = vadd.f32 %v410, %v428
  %449 = vst [vmem:[%s5] sm:$0xff] %v433
  %450 = vst [vmem:[%s5 + $0x8] sm:$0xff] %v434
  %451 = vst [vmem:[%s5 + $0x10] sm:$0xff] %v435
  %452 = vst [vmem:[%s5 + $0x18] sm:$0xff] %v436
  %453 = vst [vmem:[%s5 + $0x20] sm:$0xff] %v437
  %454 = vst [vmem:[%s5 + $0x28] sm:$0xff] %v438
  %455 = vst [vmem:[%s5 + $0x30] sm:$0xff] %v439
  %456 = vst [vmem:[%s5 + $0x38] sm:$0xff] %v440
  %457 = vst [vmem:[%s5 + $0x40] sm:$0xff] %v441
  %458 = vst [vmem:[%s5 + $0x48] sm:$0xff] %v442
  %459 = vst [vmem:[%s5 + $0x50] sm:$0xff] %v443
  %460 = vst [vmem:[%s5 + $0x58] sm:$0xff] %v444
  %461 = vst [vmem:[%s5 + $0x60] sm:$0xff] %v445
  %462 = vst [vmem:[%s5 + $0x68] sm:$0xff] %v446
  %463 = vst [vmem:[%s5 + $0x70] sm:$0xff] %v447
  %464 = vst [vmem:[%s5 + $0x78] sm:$0xff] %v448
  // Predicated region
  $region22: #{tdnn_forward.3} parent=0 // pred_check
    _
  $region23: #{tdnn_forward.3} parent=0 // pred_check_branch
    %466 = sbr.rel (0) target = $region25
  $region24: #{tdnn_forward.3} parent=0 // pred_region
    _
  $region25: #{tdnn_forward.3} parent=0 // pred_fallthru
    _
  // Predicated region
  $region26: #{tdnn_forward.3} parent=0 // pred_check
    _
  $region27: #{tdnn_forward.3} parent=0 // pred_check_branch
    %468 = sbr.rel (0) target = $region29
  $region28: #{tdnn_forward.3} parent=0 // pred_region
    _
  $region29: #{tdnn_forward.3} parent=0 // pred_fallthru
    _

// kernel: tdnn_forward.2
$region0: #{tdnn_forward.2}
  #allocation0 [shape = 'u32[]', space=smem, size = 0x4, offset = 0x4, fixed_abs, tag = 'smem constant byte address 0x4 - core index']
  #allocation1 [shape = 'u32[144,128]{1,0:T(1,128)}', space=vmem, size = 0x12000, scoped, tag = 'internal scratch']
  %s0 = inlined_call_operand.vmem [shape: bf16[32,128], index: 0, kind: input, shape index: {}]
  %s1 = inlined_call_operand.vmem [shape: bf16[128,512], index: 1, kind: input, shape index: {}]
  %s2 = inlined_call_operand.vmem [shape: f32[1,512], index: 2, kind: input, shape index: {}]
  %s3 = inlined_call_operand.vmem [shape: f32[1,1,512], index: 3, kind: output, shape index: {0}]
  %s4 = inlined_call_operand.vmem [shape: f32[1,1,512], index: 4, kind: output, shape index: {1}]
  %5 = xla_tuple %s3, %s4
  %s6 = sld [smem:[#allocation0]]
  $region38: #{tdnn_forward.2} parent=0
    _
  %s8 = ssub.s32 1, %s6
  %s9 = scalar_select 0, %s8, %s6
  // Predicated region
  $region2: #{tdnn_forward.2} parent=0 // pred_check
    _
  $region3: #{tdnn_forward.2} parent=0 // pred_check_branch
    %11 = sbr.rel (0) target = $region5
  $region4: #{tdnn_forward.2} parent=0 // pred_region
    _
  $region5: #{tdnn_forward.2} parent=0 // pred_fallthru
    _
  // Predicated region
  $region6: #{tdnn_forward.2} parent=0 // pred_check
    _
  $region7: #{tdnn_forward.2} parent=0 // pred_check_branch
    %13 = sbr.rel (0) target = $region9
  $region8: #{tdnn_forward.2} parent=0 // pred_region
    _
  $region9: #{tdnn_forward.2} parent=0 // pred_fallthru
    _
  // Predicated region
  $region10: #{tdnn_forward.2} parent=0 // pred_check
    _
  $region11: #{tdnn_forward.2} parent=0 // pred_check_branch
    %15 = sbr.rel (0) target = $region13
  $region12: #{tdnn_forward.2} parent=0 // pred_region
    _
  $region13: #{tdnn_forward.2} parent=0 // pred_fallthru
    _
  %v17 = vld [vmem:[%s0] sm:$0xf]
  %v18 = vld [vmem:[%s0 + $0x4] sm:$0xf]
  %v19 = vld [vmem:[%s0 + $0x8] sm:$0xf]
  %v20 = vld [vmem:[%s0 + $0xc] sm:$0xf]
  %v21 = vld [vmem:[%s1] sm:$0xff]
  %v22 = vld [vmem:[%s1 + $0x8] sm:$0xff]
  %v23 = vld [vmem:[%s1 + $0x10] sm:$0xff]
  %v24 = vld [vmem:[%s1 + $0x18] sm:$0xff]
  %v25 = vld [vmem:[%s1 + $0x20] sm:$0xff]
  %v26 = vld [vmem:[%s1 + $0x28] sm:$0xff]
  %v27 = vld [vmem:[%s1 + $0x30] sm:$0xff]
  %v28 = vld [vmem:[%s1 + $0x38] sm:$0xff]
  %v29 = vld [vmem:[%s1 + $0x40] sm:$0xff]
  %v30 = vld [vmem:[%s1 + $0x48] sm:$0xff]
  %v31 = vld [vmem:[%s1 + $0x50] sm:$0xff]
  %v32 = vld [vmem:[%s1 + $0x58] sm:$0xff]
  %v33 = vld [vmem:[%s1 + $0x60] sm:$0xff]
  %v34 = vld [vmem:[%s1 + $0x68] sm:$0xff]
  %v35 = vld [vmem:[%s1 + $0x70] sm:$0xff]
  %v36 = vld [vmem:[%s1 + $0x78] sm:$0xff]
  %v37 = vld [vmem:[%s1 + $0x80] sm:$0xff]
  %v38 = vld [vmem:[%s1 + $0x88] sm:$0xff]
  %v39 = vld [vmem:[%s1 + $0x90] sm:$0xff]
  %v40 = vld [vmem:[%s1 + $0x98] sm:$0xff]
  %v41 = vld [vmem:[%s1 + $0xa0] sm:$0xff]
  %v42 = vld [vmem:[%s1 + $0xa8] sm:$0xff]
  %v43 = vld [vmem:[%s1 + $0xb0] sm:$0xff]
  %v44 = vld [vmem:[%s1 + $0xb8] sm:$0xff]
  %v45 = vld [vmem:[%s1 + $0xc0] sm:$0xff]
  %v46 = vld [vmem:[%s1 + $0xc8] sm:$0xff]
  %v47 = vld [vmem:[%s1 + $0xd0] sm:$0xff]
  %v48 = vld [vmem:[%s1 + $0xd8] sm:$0xff]
  %v49 = vld [vmem:[%s1 + $0xe0] sm:$0xff]
  %v50 = vld [vmem:[%s1 + $0xe8] sm:$0xff]
  %v51 = vld [vmem:[%s1 + $0xf0] sm:$0xff]
  %v52 = vld [vmem:[%s1 + $0xf8] sm:$0xff]
  %v53 = vld [vmem:[%s2] sm:$0xf]
  %v55 = vlaneseq
  %v56 = vshrl.u32 %v55, 7
  %v57 = vsub.s32 0, %v56
  %v58 = vrot.slane %v53, %v57
  %v59 = vlaneseq
  %v60 = vshrl.u32 %v59, 7
  %v61 = vsub.s32 1, %v60
  %v62 = vrot.slane %v53, %v61
  %v63 = vlaneseq
  %v64 = vshrl.u32 %v63, 7
  %v65 = vsub.s32 2, %v64
  %v66 = vrot.slane %v53, %v65
  %v67 = vlaneseq
  %v68 = vshrl.u32 %v67, 7
  %v69 = vsub.s32 3, %v68
  %v70 = vrot.slane %v53, %v69
  %v79 = vunpack.c.l.b16 %v17
  %v80 = vunpack.c.l.b16 %v18
  %v81 = vunpack.c.l.b16 %v19
  %v82 = vunpack.c.l.b16 %v20
  %v83 = vpack.c.b16 %v80, %v79
  %v84 = vpack.c.b16 %v82, %v81
  %v119 = vunpack.c.l.b16 %v21
  %v120 = vunpack.c.h.b16 %v21
  %v121 = vunpack.c.l.b16 %v22
  %v122 = vunpack.c.h.b16 %v22
  %v123 = vunpack.c.l.b16 %v23
  %v124 = vunpack.c.h.b16 %v23
  %v125 = vunpack.c.l.b16 %v24
  %v126 = vunpack.c.h.b16 %v24
  %v127 = vunpack.c.l.b16 %v25
  %v128 = vunpack.c.h.b16 %v25
  %v129 = vunpack.c.l.b16 %v26
  %v130 = vunpack.c.h.b16 %v26
  %v131 = vunpack.c.l.b16 %v27
  %v132 = vunpack.c.h.b16 %v27
  %v133 = vunpack.c.l.b16 %v28
  %v134 = vunpack.c.h.b16 %v28
  %v135 = vunpack.c.l.b16 %v29
  %v136 = vunpack.c.h.b16 %v29
  %v137 = vunpack.c.l.b16 %v30
  %v138 = vunpack.c.h.b16 %v30
  %v139 = vunpack.c.l.b16 %v31
  %v140 = vunpack.c.h.b16 %v31
  %v141 = vunpack.c.l.b16 %v32
  %v142 = vunpack.c.h.b16 %v32
  %v143 = vunpack.c.l.b16 %v33
  %v144 = vunpack.c.h.b16 %v33
  %v145 = vunpack.c.l.b16 %v34
  %v146 = vunpack.c.h.b16 %v34
  %v147 = vunpack.c.l.b16 %v35
  %v148 = vunpack.c.h.b16 %v35
  %v149 = vunpack.c.l.b16 %v36
  %v150 = vunpack.c.h.b16 %v36
  %v151 = vunpack.c.l.b16 %v37
  %v152 = vunpack.c.h.b16 %v37
  %v153 = vunpack.c.l.b16 %v38
  %v154 = vunpack.c.h.b16 %v38
  %v155 = vunpack.c.l.b16 %v39
  %v156 = vunpack.c.h.b16 %v39
  %v157 = vunpack.c.l.b16 %v40
  %v158 = vunpack.c.h.b16 %v40
  %v159 = vunpack.c.l.b16 %v41
  %v160 = vunpack.c.h.b16 %v41
  %v161 = vunpack.c.l.b16 %v42
  %v162 = vunpack.c.h.b16 %v42
  %v163 = vunpack.c.l.b16 %v43
  %v164 = vunpack.c.h.b16 %v43
  %v165 = vunpack.c.l.b16 %v44
  %v166 = vunpack.c.h.b16 %v44
  %v167 = vunpack.c.l.b16 %v45
  %v168 = vunpack.c.h.b16 %v45
  %v169 = vunpack.c.l.b16 %v46
  %v170 = vunpack.c.h.b16 %v46
  %v171 = vunpack.c.l.b16 %v47
  %v172 = vunpack.c.h.b16 %v47
  %v173 = vunpack.c.l.b16 %v48
  %v174 = vunpack.c.h.b16 %v48
  %v175 = vunpack.c.l.b16 %v49
  %v176 = vunpack.c.h.b16 %v49
  %v177 = vunpack.c.l.b16 %v50
  %v178 = vunpack.c.h.b16 %v50
  %v179 = vunpack.c.l.b16 %v51
  %v180 = vunpack.c.h.b16 %v51
  %v181 = vunpack.c.l.b16 %v52
  %v182 = vunpack.c.h.b16 %v52
  %v183 = vpack.c.b16 %v123, %v119
  %v184 = vpack.c.b16 %v124, %v120
  %v185 = vpack.c.b16 %v125, %v121
  %v186 = vpack.c.b16 %v126, %v122
  %v187 = vpack.c.b16 %v131, %v127
  %v188 = vpack.c.b16 %v132, %v128
  %v189 = vpack.c.b16 %v133, %v129
  %v190 = vpack.c.b16 %v134, %v130
  %v191 = vpack.c.b16 %v139, %v135
  %v192 = vpack.c.b16 %v140, %v136
  %v193 = vpack.c.b16 %v141, %v137
  %v194 = vpack.c.b16 %v142, %v138
  %v195 = vpack.c.b16 %v147, %v143
  %v196 = vpack.c.b16 %v148, %v144
  %v197 = vpack.c.b16 %v149, %v145
  %v198 = vpack.c.b16 %v150, %v146
  %v199 = vpack.c.b16 %v155, %v151
  %v200 = vpack.c.b16 %v156, %v152
  %v201 = vpack.c.b16 %v157, %v153
  %v202 = vpack.c.b16 %v158, %v154
  %v203 = vpack.c.b16 %v163, %v159
  %v204 = vpack.c.b16 %v164, %v160
  %v205 = vpack.c.b16 %v165, %v161
  %v206 = vpack.c.b16 %v166, %v162
  %v207 = vpack.c.b16 %v171, %v167
  %v208 = vpack.c.b16 %v172, %v168
  %v209 = vpack.c.b16 %v173, %v169
  %v210 = vpack.c.b16 %v174, %v170
  %v211 = vpack.c.b16 %v179, %v175
  %v212 = vpack.c.b16 %v180, %v176
  %v213 = vpack.c.b16 %v181, %v177
  %v214 = vpack.c.b16 %v182, %v178
  %247 = vmatprep.subr.bf16.mxu0 %v184
  %248 = vmatpush1.bf16.msra.mxu0 %v183
  %249 = vmatprep.subr.bf16.mxu0 %v188
  %250 = vmatpush1.bf16.msra.mxu0 %v187
  %251 = vmatprep.subr.bf16.mxu0 %v192
  %252 = vmatpush1.bf16.msra.mxu0 %v191
  %253 = vmatprep.subr.bf16.mxu0 %v196
  %254 = vmatpush1.bf16.msra.mxu0 %v195
  %255 = vmatprep.subr.bf16.mxu0 %v200
  %256 = vmatpush1.bf16.msra.mxu0 %v199
  %257 = vmatprep.subr.bf16.mxu0 %v204
  %258 = vmatpush1.bf16.msra.mxu0 %v203
  %259 = vmatprep.subr.bf16.mxu0 %v208
  %260 = vmatpush1.bf16.msra.mxu0 %v207
  %261 = vmatprep.subr.bf16.mxu0 %v212
  %262 = vmatpush1.bf16.msra.mxu0 %v211
  %263 = vmatprep.subr.bf16.mxu0 0
  %264 = vmatpush1.bf16.msra.mxu0 0
  %265 = vmatprep.subr.bf16.mxu0 0
  %266 = vmatpush1.bf16.msra.mxu0 0
  %267 = vmatprep.subr.bf16.mxu0 0
  %268 = vmatpush1.bf16.msra.mxu0 0
  %269 = vmatprep.subr.bf16.mxu0 0
  %270 = vmatpush1.bf16.msra.mxu0 0
  %271 = vmatprep.subr.bf16.mxu0 0
  %272 = vmatpush1.bf16.msra.mxu0 0
  %273 = vmatprep.subr.bf16.mxu0 0
  %274 = vmatpush1.bf16.msra.mxu0 0
  %275 = vmatprep.subr.bf16.mxu0 0
  %276 = vmatpush1.bf16.msra.mxu0 0
  %277 = vmatprep.subr.bf16.mxu0 0
  %278 = vmatpush1.bf16.msra.mxu0 0
  %279 = vmatprep.mubr.bf16.mxu0 0
  %280 = vmatmul.mubr.bf16.gmra.mrb[0].mxu0 %v83
  %v281 = vpop.f32.mrb[0].mxu0
  %v282 = vadd.f32 %v58, %v281
  %v283 = vpop.f32.mrb[0].mxu0
  %v284 = vadd.f32 %v62, %v283
  %v285 = vpop.f32.mrb[0].mxu0
  %v286 = vadd.f32 %v58, %v285
  %v287 = vpop.f32.mrb[0].mxu0
  %v288 = vadd.f32 %v62, %v287
  %289 = vmatprep.mubr.bf16.mxu0 0
  %290 = vmatmul.mubr.bf16.gmra.mrb[0].mxu0 %v84
  %v291 = vpop.f32.mrb[0].mxu0
  %v292 = vadd.f32 %v58, %v291
  %v293 = vpop.f32.mrb[0].mxu0
  %v294 = vadd.f32 %v62, %v293
  %v295 = vpop.f32.mrb[0].mxu0
  %v296 = vadd.f32 %v58, %v295
  %v297 = vpop.f32.mrb[0].mxu0
  %v298 = vadd.f32 %v62, %v297
  %299 = vdwg.mxu0
  %300 = vmatprep.subr.bf16.mxu0 %v186
  %301 = vmatpush1.bf16.msra.mxu0 %v185
  %302 = vmatprep.subr.bf16.mxu0 %v190
  %303 = vmatpush1.bf16.msra.mxu0 %v189
  %304 = vmatprep.subr.bf16.mxu0 %v194
  %305 = vmatpush1.bf16.msra.mxu0 %v193
  %306 = vmatprep.subr.bf16.mxu0 %v198
  %307 = vmatpush1.bf16.msra.mxu0 %v197
  %308 = vmatprep.subr.bf16.mxu0 %v202
  %309 = vmatpush1.bf16.msra.mxu0 %v201
  %310 = vmatprep.subr.bf16.mxu0 %v206
  %311 = vmatpush1.bf16.msra.mxu0 %v205
  %312 = vmatprep.subr.bf16.mxu0 %v210
  %313 = vmatpush1.bf16.msra.mxu0 %v209
  %314 = vmatprep.subr.bf16.mxu0 %v214
  %315 = vmatpush1.bf16.msra.mxu0 %v213
  %316 = vmatprep.subr.bf16.mxu0 0
  %317 = vmatpush1.bf16.msra.mxu0 0
  %318 = vmatprep.subr.bf16.mxu0 0
  %319 = vmatpush1.bf16.msra.mxu0 0
  %320 = vmatprep.subr.bf16.mxu0 0
  %321 = vmatpush1.bf16.msra.mxu0 0
  %322 = vmatprep.subr.bf16.mxu0 0
  %323 = vmatpush1.bf16.msra.mxu0 0
  %324 = vmatprep.subr.bf16.mxu0 0
  %325 = vmatpush1.bf16.msra.mxu0 0
  %326 = vmatprep.subr.bf16.mxu0 0
  %327 = vmatpush1.bf16.msra.mxu0 0
  %328 = vmatprep.subr.bf16.mxu0 0
  %329 = vmatpush1.bf16.msra.mxu0 0
  %330 = vmatprep.subr.bf16.mxu0 0
  %331 = vmatpush1.bf16.msra.mxu0 0
  %332 = vmatprep.mubr.bf16.mxu0 0
  %333 = vmatmul.mubr.bf16.gmra.mrb[0].mxu0 %v83
  %v334 = vpop.f32.mrb[0].mxu0
  %v335 = vadd.f32 %v66, %v334
  %v336 = vpop.f32.mrb[0].mxu0
  %v337 = vadd.f32 %v70, %v336
  %v338 = vpop.f32.mrb[0].mxu0
  %v339 = vadd.f32 %v66, %v338
  %v340 = vpop.f32.mrb[0].mxu0
  %v341 = vadd.f32 %v70, %v340
  %342 = vmatprep.mubr.bf16.mxu0 0
  %343 = vmatmul.mubr.bf16.gmra.mrb[0].mxu0 %v84
  %v344 = vpop.f32.mrb[0].mxu0
  %v345 = vadd.f32 %v66, %v344
  %v346 = vpop.f32.mrb[0].mxu0
  %v347 = vadd.f32 %v70, %v346
  %v348 = vpop.f32.mrb[0].mxu0
  %v349 = vadd.f32 %v66, %v348
  %v350 = vpop.f32.mrb[0].mxu0
  %v351 = vadd.f32 %v70, %v350
  %352 = vdwg.mxu0
  %v353 = vmax.f32 %v282, 0.0
  %v354 = vmax.f32 %v284, 0.0
  %v355 = vmax.f32 %v335, 0.0
  %v356 = vmax.f32 %v337, 0.0
  %v357 = vmax.f32 %v286, 0.0
  %v358 = vmax.f32 %v288, 0.0
  %v359 = vmax.f32 %v339, 0.0
  %v360 = vmax.f32 %v341, 0.0
  %v361 = vmax.f32 %v292, 0.0
  %v362 = vmax.f32 %v294, 0.0
  %v363 = vmax.f32 %v345, 0.0
  %v364 = vmax.f32 %v347, 0.0
  %v365 = vmax.f32 %v296, 0.0
  %v366 = vmax.f32 %v298, 0.0
  %v367 = vmax.f32 %v349, 0.0
  %v368 = vmax.f32 %v351, 0.0
  %p369 = scmp.eq.s32.totalorder 0, 0
  // Predicated region
  $region14: #{tdnn_forward.2} parent=0 // pred_check
    %p370 = pneg %p369
  $region15: #{tdnn_forward.2} parent=0 // pred_check_branch
    %372 = sbr.rel (%p370) target = $region17
  $region16: #{tdnn_forward.2} parent=0 // pred_region
    %s373 = smul.u32 0, 32
    %v374 = vlaneseq
    %v375 = vshrl.u32 %v374, 7
    %v376 = vadd.s32 %v375, 8
    %v377 = vadd.s32 %v375, 16
    %v378 = vadd.s32 %v375, 24
    %v379 = vstv %s373
    %v380 = vadd.s32 %v379, %v375
    %v381 = vadd.s32 %v379, %v376
    %v382 = vadd.s32 %v379, %v377
    %v383 = vadd.s32 %v379, %v378
    %vm384 = vcmp.lt.s32.totalorder %v380, 24
    %vm385 = vcmp.lt.s32.totalorder %v381, 24
    %vm386 = vcmp.lt.s32.totalorder %v382, 24
    %vm387 = vcmp.lt.s32.totalorder %v383, 24
    %v388 = vsel %vm384, %v353, 0.0
    %v389 = vsel %vm384, %v354, 0.0
    %v390 = vsel %vm384, %v355, 0.0
    %v391 = vsel %vm384, %v356, 0.0
    %v392 = vsel %vm385, %v357, 0.0
    %v393 = vsel %vm385, %v358, 0.0
    %v394 = vsel %vm385, %v359, 0.0
    %v395 = vsel %vm385, %v360, 0.0
    %v396 = vsel %vm386, %v361, 0.0
    %v397 = vsel %vm386, %v362, 0.0
    %v398 = vsel %vm386, %v363, 0.0
    %v399 = vsel %vm386, %v364, 0.0
    %v400 = vsel %vm387, %v365, 0.0
    %v401 = vsel %vm387, %v366, 0.0
    %v402 = vsel %vm387, %v367, 0.0
    %v403 = vsel %vm387, %v368, 0.0
    %v404 = vadd.f32 %v388, %v392
    %v405 = vadd.f32 %v404, %v396
    %v406 = vadd.f32 %v405, %v400
    %v407 = vrot.slane %v406, 4
    %v408 = vadd.f32 %v406, %v407
    %v409 = vrot.slane %v408, 2
    %v410 = vadd.f32 %v408, %v409
    %v411 = vrot.slane %v410, 1
    %v412 = vadd.f32 %v410, %v411
    %v413 = vadd.f32 %v389, %v393
    %v414 = vadd.f32 %v413, %v397
    %v415 = vadd.f32 %v414, %v401
    %v416 = vrot.slane %v415, 4
    %v417 = vadd.f32 %v415, %v416
    %v418 = vrot.slane %v417, 2
    %v419 = vadd.f32 %v417, %v418
    %v420 = vrot.slane %v419, 1
    %v421 = vadd.f32 %v419, %v420
    %v422 = vadd.f32 %v390, %v394
    %v423 = vadd.f32 %v422, %v398
    %v424 = vadd.f32 %v423, %v402
    %v425 = vrot.slane %v424, 4
    %v426 = vadd.f32 %v424, %v425
    %v427 = vrot.slane %v426, 2
    %v428 = vadd.f32 %v426, %v427
    %v429 = vrot.slane %v428, 1
    %v430 = vadd.f32 %v428, %v429
    %v431 = vadd.f32 %v391, %v395
    %v432 = vadd.f32 %v431, %v399
    %v433 = vadd.f32 %v432, %v403
    %v434 = vrot.slane %v433, 4
    %v435 = vadd.f32 %v433, %v434
    %v436 = vrot.slane %v435, 2
    %v437 = vadd.f32 %v435, %v436
    %v438 = vrot.slane %v437, 1
    %v439 = vadd.f32 %v437, %v438
    %v444 = vcombine.low %v412, %v421
    %v445 = vcombine.low %v430, %v439
    %v447 = vunpack.c.l.s4 1966171168
    %v448 = vunpack.c.0.s8 %v447
    %v449 = vlaneseq
    %v450 = vshrl.u32 %v449, 7
    %v451 = vsub.s32 %v448, %v450
    %v452 = vrot.slane %v444, %v451
    %v454 = vunpack.c.l.s4 1966171168
    %v455 = vunpack.c.0.s8 %v454
    %v456 = vlaneseq
    %v457 = vshrl.u32 %v456, 7
    %v458 = vsub.s32 %v455, %v457
    %v459 = vrot.slane %v445, %v458
    %v460 = vcombine.low %v452, %v459
    %v462 = vunpack.c.l.s4 1966171168
    %v463 = vunpack.c.0.s8 %v462
    %v464 = vlaneseq
    %v465 = vshrl.u32 %v464, 7
    %v466 = vsub.s32 %v463, %v465
    %v467 = vrot.slane %v460, %v466
    %v469 = vlaneseq
    %vm470 = vcmp.ge.s32.totalorder %v469, 0
    %vm471 = vcmp.lt.s32.totalorder %v469, 512
    %vm472 = vmand %vm470, %vm471
    %473 = vst.msk [vmem:[%s3] sm:$0xf] %vm472, %v467
    %v474 = vmul.f32 %v388, %v388
    %v475 = vmul.f32 %v389, %v389
    %v476 = vmul.f32 %v390, %v390
    %v477 = vmul.f32 %v391, %v391
    %v478 = vmul.f32 %v392, %v392
    %v479 = vmul.f32 %v393, %v393
    %v480 = vmul.f32 %v394, %v394
    %v481 = vmul.f32 %v395, %v395
    %v482 = vmul.f32 %v396, %v396
    %v483 = vmul.f32 %v397, %v397
    %v484 = vmul.f32 %v398, %v398
    %v485 = vmul.f32 %v399, %v399
    %v486 = vmul.f32 %v400, %v400
    %v487 = vmul.f32 %v401, %v401
    %v488 = vmul.f32 %v402, %v402
    %v489 = vmul.f32 %v403, %v403
    %v490 = vadd.f32 %v474, %v478
    %v491 = vadd.f32 %v490, %v482
    %v492 = vadd.f32 %v491, %v486
    %v493 = vrot.slane %v492, 4
    %v494 = vadd.f32 %v492, %v493
    %v495 = vrot.slane %v494, 2
    %v496 = vadd.f32 %v494, %v495
    %v497 = vrot.slane %v496, 1
    %v498 = vadd.f32 %v496, %v497
    %v499 = vadd.f32 %v475, %v479
    %v500 = vadd.f32 %v499, %v483
    %v501 = vadd.f32 %v500, %v487
    %v502 = vrot.slane %v501, 4
    %v503 = vadd.f32 %v501, %v502
    %v504 = vrot.slane %v503, 2
    %v505 = vadd.f32 %v503, %v504
    %v506 = vrot.slane %v505, 1
    %v507 = vadd.f32 %v505, %v506
    %v508 = vadd.f32 %v476, %v480
    %v509 = vadd.f32 %v508, %v484
    %v510 = vadd.f32 %v509, %v488
    %v511 = vrot.slane %v510, 4
    %v512 = vadd.f32 %v510, %v511
    %v513 = vrot.slane %v512, 2
    %v514 = vadd.f32 %v512, %v513
    %v515 = vrot.slane %v514, 1
    %v516 = vadd.f32 %v514, %v515
    %v517 = vadd.f32 %v477, %v481
    %v518 = vadd.f32 %v517, %v485
    %v519 = vadd.f32 %v518, %v489
    %v520 = vrot.slane %v519, 4
    %v521 = vadd.f32 %v519, %v520
    %v522 = vrot.slane %v521, 2
    %v523 = vadd.f32 %v521, %v522
    %v524 = vrot.slane %v523, 1
    %v525 = vadd.f32 %v523, %v524
    %v530 = vcombine.low %v498, %v507
    %v531 = vcombine.low %v516, %v525
    %v533 = vunpack.c.l.s4 1966171168
    %v534 = vunpack.c.0.s8 %v533
    %v535 = vlaneseq
    %v536 = vshrl.u32 %v535, 7
    %v537 = vsub.s32 %v534, %v536
    %v538 = vrot.slane %v530, %v537
    %v540 = vunpack.c.l.s4 1966171168
    %v541 = vunpack.c.0.s8 %v540
    %v542 = vlaneseq
    %v543 = vshrl.u32 %v542, 7
    %v544 = vsub.s32 %v541, %v543
    %v545 = vrot.slane %v531, %v544
    %v546 = vcombine.low %v538, %v545
    %v548 = vunpack.c.l.s4 1966171168
    %v549 = vunpack.c.0.s8 %v548
    %v550 = vlaneseq
    %v551 = vshrl.u32 %v550, 7
    %v552 = vsub.s32 %v549, %v551
    %v553 = vrot.slane %v546, %v552
    %555 = vst.msk [vmem:[%s4] sm:$0xf] %vm472, %v553
  $region17: #{tdnn_forward.2} parent=0 // pred_fallthru
    _
  %p556 = scmp.ne.s32.totalorder 0, 0
  // Predicated region
  $region18: #{tdnn_forward.2} parent=0 // pred_check
    %p557 = pneg %p556
  $region19: #{tdnn_forward.2} parent=0 // pred_check_branch
    %559 = sbr.rel (%p557) target = $region21
  $region20: #{tdnn_forward.2} parent=0 // pred_region
    %v560 = vadd.f32 %v353, %v357
    %v561 = vadd.f32 %v560, %v361
    %v562 = vadd.f32 %v561, %v365
    %v563 = vrot.slane %v562, 4
    %v564 = vadd.f32 %v562, %v563
    %v565 = vrot.slane %v564, 2
    %v566 = vadd.f32 %v564, %v565
    %v567 = vrot.slane %v566, 1
    %v568 = vadd.f32 %v566, %v567
    %v569 = vadd.f32 %v354, %v358
    %v570 = vadd.f32 %v569, %v362
    %v571 = vadd.f32 %v570, %v366
    %v572 = vrot.slane %v571, 4
    %v573 = vadd.f32 %v571, %v572
    %v574 = vrot.slane %v573, 2
    %v575 = vadd.f32 %v573, %v574
    %v576 = vrot.slane %v575, 1
    %v577 = vadd.f32 %v575, %v576
    %v578 = vadd.f32 %v355, %v359
    %v579 = vadd.f32 %v578, %v363
    %v580 = vadd.f32 %v579, %v367
    %v581 = vrot.slane %v580, 4
    %v582 = vadd.f32 %v580, %v581
    %v583 = vrot.slane %v582, 2
    %v584 = vadd.f32 %v582, %v583
    %v585 = vrot.slane %v584, 1
    %v586 = vadd.f32 %v584, %v585
    %v587 = vadd.f32 %v356, %v360
    %v588 = vadd.f32 %v587, %v364
    %v589 = vadd.f32 %v588, %v368
    %v590 = vrot.slane %v589, 4
    %v591 = vadd.f32 %v589, %v590
    %v592 = vrot.slane %v591, 2
    %v593 = vadd.f32 %v591, %v592
    %v594 = vrot.slane %v593, 1
    %v595 = vadd.f32 %v593, %v594
    %v600 = vcombine.low %v568, %v577
    %v601 = vcombine.low %v586, %v595
    %v603 = vunpack.c.l.s4 1966171168
    %v604 = vunpack.c.0.s8 %v603
    %v605 = vlaneseq
    %v606 = vshrl.u32 %v605, 7
    %v607 = vsub.s32 %v604, %v606
    %v608 = vrot.slane %v600, %v607
    %v610 = vunpack.c.l.s4 1966171168
    %v611 = vunpack.c.0.s8 %v610
    %v612 = vlaneseq
    %v613 = vshrl.u32 %v612, 7
    %v614 = vsub.s32 %v611, %v613
    %v615 = vrot.slane %v601, %v614
    %v616 = vcombine.low %v608, %v615
    %v618 = vunpack.c.l.s4 1966171168
    %v619 = vunpack.c.0.s8 %v618
    %v620 = vlaneseq
    %v621 = vshrl.u32 %v620, 7
    %v622 = vsub.s32 %v619, %v621
    %v623 = vrot.slane %v616, %v622
    %v625 = vlaneseq
    %vm626 = vcmp.ge.s32.totalorder %v625, 0
    %vm627 = vcmp.lt.s32.totalorder %v625, 512
    %vm628 = vmand %vm626, %vm627
    %629 = vst.msk [vmem:[%s3] sm:$0xf] %vm628, %v623
    %v630 = vmul.f32 %v353, %v353
    %v631 = vmul.f32 %v354, %v354
    %v632 = vmul.f32 %v355, %v355
    %v633 = vmul.f32 %v356, %v356
    %v634 = vmul.f32 %v357, %v357
    %v635 = vmul.f32 %v358, %v358
    %v636 = vmul.f32 %v359, %v359
    %v637 = vmul.f32 %v360, %v360
    %v638 = vmul.f32 %v361, %v361
    %v639 = vmul.f32 %v362, %v362
    %v640 = vmul.f32 %v363, %v363
    %v641 = vmul.f32 %v364, %v364
    %v642 = vmul.f32 %v365, %v365
    %v643 = vmul.f32 %v366, %v366
    %v644 = vmul.f32 %v367, %v367
    %v645 = vmul.f32 %v368, %v368
    %v646 = vadd.f32 %v630, %v634
    %v647 = vadd.f32 %v646, %v638
    %v648 = vadd.f32 %v647, %v642
    %v649 = vrot.slane %v648, 4
    %v650 = vadd.f32 %v648, %v649
    %v651 = vrot.slane %v650, 2
    %v652 = vadd.f32 %v650, %v651
    %v653 = vrot.slane %v652, 1
    %v654 = vadd.f32 %v652, %v653
    %v655 = vadd.f32 %v631, %v635
    %v656 = vadd.f32 %v655, %v639
    %v657 = vadd.f32 %v656, %v643
    %v658 = vrot.slane %v657, 4
    %v659 = vadd.f32 %v657, %v658
    %v660 = vrot.slane %v659, 2
    %v661 = vadd.f32 %v659, %v660
    %v662 = vrot.slane %v661, 1
    %v663 = vadd.f32 %v661, %v662
    %v664 = vadd.f32 %v632, %v636
    %v665 = vadd.f32 %v664, %v640
    %v666 = vadd.f32 %v665, %v644
    %v667 = vrot.slane %v666, 4
    %v668 = vadd.f32 %v666, %v667
    %v669 = vrot.slane %v668, 2
    %v670 = vadd.f32 %v668, %v669
    %v671 = vrot.slane %v670, 1
    %v672 = vadd.f32 %v670, %v671
    %v673 = vadd.f32 %v633, %v637
    %v674 = vadd.f32 %v673, %v641
    %v675 = vadd.f32 %v674, %v645
    %v676 = vrot.slane %v675, 4
    %v677 = vadd.f32 %v675, %v676
    %v678 = vrot.slane %v677, 2
    %v679 = vadd.f32 %v677, %v678
    %v680 = vrot.slane %v679, 1
    %v681 = vadd.f32 %v679, %v680
    %v686 = vcombine.low %v654, %v663
    %v687 = vcombine.low %v672, %v681
    %v689 = vunpack.c.l.s4 1966171168
    %v690 = vunpack.c.0.s8 %v689
    %v691 = vlaneseq
    %v692 = vshrl.u32 %v691, 7
    %v693 = vsub.s32 %v690, %v692
    %v694 = vrot.slane %v686, %v693
    %v696 = vunpack.c.l.s4 1966171168
    %v697 = vunpack.c.0.s8 %v696
    %v698 = vlaneseq
    %v699 = vshrl.u32 %v698, 7
    %v700 = vsub.s32 %v697, %v699
    %v701 = vrot.slane %v687, %v700
    %v702 = vcombine.low %v694, %v701
    %v704 = vunpack.c.l.s4 1966171168
    %v705 = vunpack.c.0.s8 %v704
    %v706 = vlaneseq
    %v707 = vshrl.u32 %v706, 7
    %v708 = vsub.s32 %v705, %v707
    %v709 = vrot.slane %v702, %v708
    %711 = vst.msk [vmem:[%s4] sm:$0xf] %vm628, %v709
  $region21: #{tdnn_forward.2} parent=0 // pred_fallthru
    _
  // Predicated region
  $region22: #{tdnn_forward.2} parent=0 // pred_check
    _
  $region23: #{tdnn_forward.2} parent=0 // pred_check_branch
    %713 = sbr.rel (0) target = $region25
  $region24: #{tdnn_forward.2} parent=0 // pred_region
    _
  $region25: #{tdnn_forward.2} parent=0 // pred_fallthru
    _
  // Predicated region
  $region26: #{tdnn_forward.2} parent=0 // pred_check
    _
  $region27: #{tdnn_forward.2} parent=0 // pred_check_branch
    %715 = sbr.rel (0) target = $region29
  $region28: #{tdnn_forward.2} parent=0 // pred_region
    _
  $region29: #{tdnn_forward.2} parent=0 // pred_fallthru
    _
  // Predicated region
  $region30: #{tdnn_forward.2} parent=0 // pred_check
    _
  $region31: #{tdnn_forward.2} parent=0 // pred_check_branch
    %717 = sbr.rel (0) target = $region33
  $region32: #{tdnn_forward.2} parent=0 // pred_region
    _
  $region33: #{tdnn_forward.2} parent=0 // pred_fallthru
    _
  // Predicated region
  $region34: #{tdnn_forward.2} parent=0 // pred_check
    _
  $region35: #{tdnn_forward.2} parent=0 // pred_check_branch
    %719 = sbr.rel (0) target = $region37
  $region36: #{tdnn_forward.2} parent=0 // pred_region
    _
  $region37: #{tdnn_forward.2} parent=0 // pred_fallthru
    _

</llo_original>
